<compile_context>
chip_gen: v6e
topology: v6e:2x2x1
jax: 0.10.0
libtpu: 0.0.40
codegen_flags: <defaults>
</compile_context>

<pallas_src>
import jax
import jax.numpy as jnp
from jax.experimental import pallas as pl
from jax.experimental.pallas import tpu as pltpu


def _round_up(a, m):
    return ((a + m - 1) // m) * m


# ------------------------- linear-head kernel body --------------------------
def _linear_head_kernel(x_ref, w_ref, b_ref, o_ref):
    # x_ref: (TILE_M, D) tile of flattened NCHW input (normalization already
    #        folded into w/b), w_ref: (D, K_pad) resident, b_ref: (1, K_pad).
    o_ref[...] = (
        jnp.dot(x_ref[...], w_ref[...], preferred_element_type=jnp.float32)
        + b_ref[...]
    )


def normalized_forward(x, mean, std, w, b, *, tile_m=512, use_bf16=False):
    """Forward of `Normalized`: per-channel (x - mean)/std then classifier head.

    x:    (N, C, H, W) f32
    mean: (C,) f32, std: (C,) f32
    w:    (C*H*W, K) f32, b: (K,) or (1, K) f32
    Returns (N, K) f32 logits.
    """
    N, C, H, W = x.shape
    D = C * H * W
    K = w.shape[1]
    hw = H * W

    # ---- fold the per-channel normalization into the head weights/bias -----
    #   ((x - shift) * scale) @ w + b
    # == x @ (scale[:, None] * w) + (b - (shift * scale) @ w)
    scale = jnp.repeat(1.0 / std.astype(jnp.float32), hw)            # (D,)
    shift = jnp.repeat(mean.astype(jnp.float32), hw)                 # (D,)
    w32 = w.astype(jnp.float32)
    w_fold = scale[:, None] * w32                                     # (D, K)
    b_fold = b.reshape(1, K).astype(jnp.float32) - (shift * scale)[None, :] @ w32

    # Lane-dense output: pad the class dim to exactly one 128-lane width.
    k_pad = max(128, _round_up(K, 128))
    w_pad = jnp.zeros((D, k_pad), jnp.float32).at[:, :K].set(w_fold)
    b_pad = jnp.zeros((1, k_pad), jnp.float32).at[:, :K].set(b_fold)

    x_flat = x.reshape(N, D).astype(jnp.float32)

    if use_bf16:
        # Halves the x HBM stream and cuts MXU passes (v5e/v7x); logits may
        # deviate ~1e-3 from the f32 reference, so this is opt-in.
        x_flat = x_flat.astype(jnp.bfloat16)
        w_pad = w_pad.astype(jnp.bfloat16)

    # ---- batch tiling (no wrapper-side jnp.pad of x) ------------------------
    tm = max(8, min(_round_up(tile_m, 8), _round_up(N, 8)))
    # Give the "parallel" grid axis >= 2 steps when there is enough work so
    # both v7x TensorCores are fed (harmless on single-TC v5e/v6e).
    if N >= 16 and pl.cdiv(N, tm) < 2:
        tm = max(8, _round_up(pl.cdiv(N, 2), 8))
    grid = (pl.cdiv(N, tm),)

    # ---- explicit VMEM budget ------------------------------------------------
    xw_bytes = 2 if use_bf16 else 4
    vmem_need = (2 * tm * D * xw_bytes       # streamed x tile (double-buffered)
                 + 2 * tm * k_pad * 4        # output tile   (double-buffered)
                 + D * k_pad * xw_bytes      # resident weights (single buffer)
                 + k_pad * 4)                # bias
    vmem_limit = int(min(max(vmem_need * 5 // 4 + (1 << 20), 32 << 20), 48 << 20))

    out = pl.pallas_call(
        _linear_head_kernel,
        out_shape=jax.ShapeDtypeStruct((N, k_pad), jnp.float32),
        grid=grid,
        in_specs=[
            pl.BlockSpec((tm, D), lambda i: (i, 0)),            # x (streams over N)
            pl.BlockSpec((D, k_pad), lambda i: (0, 0),
                         pipeline_mode=pl.Buffered(1)),          # weights (resident)
            pl.BlockSpec((1, k_pad), lambda i: (0, 0),
                         pipeline_mode=pl.Buffered(1)),          # bias (resident)
        ],
        out_specs=pl.BlockSpec((tm, k_pad), lambda i: (i, 0)),
        compiler_params=pltpu.CompilerParams(
            dimension_semantics=("parallel",),
            vmem_limit_bytes=vmem_limit),
    )(x_flat, w_pad, b_pad)

    return out[:N, :K]


if __name__ == "__main__":
    key = jax.random.PRNGKey(0)
    k_x, k_w, k_b = jax.random.split(key, 3)

    N, C, H, W = 2, 3, 16, 16
    NUM_CLASSES = 10

    # CIFAR-style images in [0, 1]
    x = jax.random.uniform(k_x, (N, C, H, W), dtype=jnp.float32)

    # Normalization constants from Normalized.__init__
    mean = jnp.array([0.4914, 0.4822, 0.4465], dtype=jnp.float32)
    std = jnp.array([0.2023, 0.1994, 0.201], dtype=jnp.float32)

    # Deterministic stand-in model parameters
    w = 0.02 * jax.random.normal(k_w, (C * H * W, NUM_CLASSES), dtype=jnp.float32)
    b = 0.02 * jax.random.normal(k_b, (1, NUM_CLASSES), dtype=jnp.float32)

    logits = normalized_forward(x, mean, std, w, b)
    jax.block_until_ready(logits)

    # Pure-JAX reference with the exact PyTorch broadcasting semantics.
    x_ref = (x - mean[None, :, None, None]) / std[None, :, None, None]
    ref = x_ref.reshape(N, -1) @ w + b
    assert logits.shape == (N, NUM_CLASSES)
    assert jnp.allclose(logits, ref, atol=1e-4, rtol=1e-4)

    print("KERNEL_OK")
</pallas_src>

<mosaic_0001>
module attributes {stable_mosaic.version = 11 : i64} {
  func.func @_linear_head_kernel(%arg0: i32, %arg1: memref<8x768xf32, #tpu.memory_space<vmem>>, %arg2: memref<768x128xf32, #tpu.memory_space<vmem>>, %arg3: memref<1x128xf32, #tpu.memory_space<vmem>>, %arg4: memref<8x128xf32, #tpu.memory_space<vmem>>) attributes {dimension_semantics = [#tpu.dimension_semantics<parallel>], iteration_bounds = array<i64: 1>, scalar_prefetch = 0 : i64, scratch_operands = 0 : i64, tpu.core_type = #tpu.core_type<tc>, window_params = [{transform_indices = @transform_0, window_bounds = array<i64: 8, 768>}, {pipeline_mode = #tpu.pipeline_mode<synchronous>, transform_indices = @transform_1, window_bounds = array<i64: 768, 128>}, {pipeline_mode = #tpu.pipeline_mode<synchronous>, transform_indices = @transform_2, window_bounds = array<i64: 1, 128>}, {transform_indices = @transform_3, window_bounds = array<i64: 8, 128>}]} {
    %c0 = arith.constant 0 : index
    %c0_0 = arith.constant 0 : index
    %0 = vector.load %arg1[%c0, %c0_0] : memref<8x768xf32, #tpu.memory_space<vmem>>, vector<8x768xf32>
    %c0_1 = arith.constant 0 : index
    %c0_2 = arith.constant 0 : index
    %1 = vector.load %arg2[%c0_1, %c0_2] : memref<768x128xf32, #tpu.memory_space<vmem>>, vector<768x128xf32>
    %cst = arith.constant dense<0.000000e+00> : vector<8x128xf32>
    %2 = tpu.matmul %0, %1, %cst {dimension_numbers = #tpu.dot_dimension_numbers<[1], [0], [0], [1], [0, 0, 1, 1], [], []>} : vector<8x768xf32>, vector<768x128xf32>, vector<8x128xf32> -> vector<8x128xf32>
    %c0_3 = arith.constant 0 : index
    %c0_4 = arith.constant 0 : index
    %3 = vector.load %arg3[%c0_3, %c0_4] : memref<1x128xf32, #tpu.memory_space<vmem>>, vector<1x128xf32>
    %4 = vector.broadcast %3 : vector<1x128xf32> to vector<8x128xf32>
    %5 = arith.addf %2, %4 : vector<8x128xf32>
    %c0_5 = arith.constant 0 : index
    %c0_6 = arith.constant 0 : index
    %6 = vector.load %arg4[%c0_5, %c0_6] : memref<8x128xf32, #tpu.memory_space<vmem>>, vector<8x128xf32>
    tpu.vector_store %arg4[%c0_5, %c0_6], %5 {strides = array<i32>} : memref<8x128xf32, #tpu.memory_space<vmem>>, vector<8x128xf32>,
    return
  }
  func.func @transform_0(%arg0: i32) -> (i32, i32) {
    %c0_i32 = arith.constant 0 : i32
    %c0_i32_0 = arith.constant 0 : i32
    return %arg0, %c0_i32 : i32, i32
  }
  func.func @transform_1(%arg0: i32) -> (i32, i32) {
    %c0_i32 = arith.constant 0 : i32
    %c0_i32_0 = arith.constant 0 : i32
    %c0_i32_1 = arith.constant 0 : i32
    return %c0_i32, %c0_i32_0 : i32, i32
  }
  func.func @transform_2(%arg0: i32) -> (i32, i32) {
    %c0_i32 = arith.constant 0 : i32
    %c0_i32_0 = arith.constant 0 : i32
    %c0_i32_1 = arith.constant 0 : i32
    return %c0_i32, %c0_i32_0 : i32, i32
  }
  func.func @transform_3(%arg0: i32) -> (i32, i32) {
    %c0_i32 = arith.constant 0 : i32
    %c0_i32_0 = arith.constant 0 : i32
    return %arg0, %c0_i32 : i32, i32
  }
}

</mosaic_0001>

<llo_original>
// kernel: tpu_custom_call.1
$region0: #{tpu_custom_call.1}
  #allocation0 [shape = 'u32[]', space=smem, size = 0x4, offset = 0x4, fixed_abs, tag = 'smem constant byte address 0x4 - core index']
  #allocation1 [shape = 'u32[144,128]{1,0:T(1,128)}', space=vmem, size = 0x12000, scoped, tag = 'internal scratch']
  %s0 = inlined_call_operand.hbm [shape: f32[2,768], index: 0, kind: input, shape index: {}]
  %s1 = inlined_call_operand.hbm [shape: f32[768,128], index: 1, kind: input, shape index: {}]
  %s2 = inlined_call_operand.vmem [shape: f32[1,128], index: 2, kind: input, shape index: {}]
  %s3 = inlined_call_operand.hbm [shape: f32[2,128], index: 3, kind: output, shape index: {}]
  %s4 = sld [smem:[#allocation0]]
  $region30: #{tpu_custom_call.1} parent=0
    _
  %s6 = ssub.s32 1, %s4
  %s7 = scalar_select 0, %s6, %s4
  $region1: #{tpu_custom_call.1} parent=0
    #allocation2 [shape = 'u8[24576]{0}', space=vmem, size = 0x6000, scoped, tag = 'input window, operand 0, single buffered']
    #allocation3 [shape = 's32[1]{0}', space=sflag, size = 0x4, scoped, tag = 'scoped memory for tpu_custom_call.1']
    #allocation4 [shape = 's32[1]{0}', space=sflag, size = 0x4, scoped, tag = 'scoped memory for tpu_custom_call.1']
    #allocation5 [shape = 'u8[393216]{0}', space=vmem, size = 0x60000, scoped, tag = 'input window, operand 1, single buffered']
    #allocation6 [shape = 's32[1]{0}', space=sflag, size = 0x4, scoped, tag = 'scoped memory for tpu_custom_call.1']
    #allocation7 [shape = 'u8[4096]{0}', space=vmem, size = 0x1000, scoped, tag = 'output window, operand 0, single buffered']
    %8 = vsyncpa [#allocation3], 0
    %9 = vsyncpa [#allocation6], 0
    %10 = vsyncpa [#allocation4], 0
    // Predicated region
    $region2: #{tpu_custom_call.1} parent=1 // pred_check
      _
    $region3: #{tpu_custom_call.1} parent=1 // pred_check_branch
      %12 = sbr.rel (0) target = $region5
    $region4: #{tpu_custom_call.1} parent=1 // pred_region
      %s14 = ssub.s32 768, 192
      %15 = vsyncadd [#allocation3], %s14
      %s16 = sshll.u32 [#allocation2], 4
      %s17 = int_to_ptr.vmem [resolvable:$true] %s16
      %22 = dma.hbm_to_vmem [thread:$0]  %s0, 192, %s17, [#allocation3], 192, 192, 12
    $region5: #{tpu_custom_call.1} parent=1 // pred_fallthru
      _
    // Predicated region
    $region6: #{tpu_custom_call.1} parent=1 // pred_check
      _
    $region7: #{tpu_custom_call.1} parent=1 // pred_check_branch
      %24 = sbr.rel (0) target = $region9
    $region8: #{tpu_custom_call.1} parent=1 // pred_region
      %s26 = ssub.s32 12288, 12288
      %27 = vsyncadd [#allocation6], %s26
      %s28 = sshll.u32 [#allocation5], 4
      %s29 = int_to_ptr.vmem [resolvable:$true] %s28
      %34 = dma.hbm_to_vmem [thread:$0]  %s1, 12288, %s29, [#allocation6], 128, 128, 8
    $region9: #{tpu_custom_call.1} parent=1 // pred_fallthru
      _
    // Predicated region
    $region10: #{tpu_custom_call.1} parent=1 // pred_check
      _
    $region11: #{tpu_custom_call.1} parent=1 // pred_check_branch
      %36 = sbr.rel (0) target = $region13
    $region12: #{tpu_custom_call.1} parent=1 // pred_region
      _
    $region13: #{tpu_custom_call.1} parent=1 // pred_fallthru
      _
    // Predicated region
    $region14: #{tpu_custom_call.1} parent=1 // pred_check
      _
    $region15: #{tpu_custom_call.1} parent=1 // pred_check_branch
      %38 = sbr.rel (0) target = $region17
    $region16: #{tpu_custom_call.1} parent=1 // pred_region
      %39 = dma.done [#allocation3], 768
    $region17: #{tpu_custom_call.1} parent=1 // pred_fallthru
      _
    // Predicated region
    $region18: #{tpu_custom_call.1} parent=1 // pred_check
      _
    $region19: #{tpu_custom_call.1} parent=1 // pred_check_branch
      %41 = sbr.rel (0) target = $region21
    $region20: #{tpu_custom_call.1} parent=1 // pred_region
      %42 = dma.done [#allocation6], 12288
    $region21: #{tpu_custom_call.1} parent=1 // pred_fallthru
      _
    %v43 = vld [vmem:[#allocation2] sm:$0xff]
    %v44 = vld [vmem:[#allocation2 + $0x8] sm:$0xf]
    %v45 = vld [vmem:[#allocation2 + $0xc] sm:$0xff]
    %v46 = vld [vmem:[#allocation2 + $0x14] sm:$0xf]
    %v47 = vld [vmem:[#allocation2 + $0x18] sm:$0xff]
    %v48 = vld [vmem:[#allocation2 + $0x20] sm:$0xf]
    %v49 = vld [vmem:[#allocation2 + $0x24] sm:$0xff]
    %v50 = vld [vmem:[#allocation2 + $0x2c] sm:$0xf]
    %v51 = vld [vmem:[#allocation5] sm:$0xff]
    %v52 = vld [vmem:[#allocation5 + $0x8] sm:$0xff]
    %v53 = vld [vmem:[#allocation5 + $0x10] sm:$0xff]
    %v54 = vld [vmem:[#allocation5 + $0x18] sm:$0xff]
    %v55 = vld [vmem:[#allocation5 + $0x20] sm:$0xff]
    %v56 = vld [vmem:[#allocation5 + $0x28] sm:$0xff]
    %v57 = vld [vmem:[#allocation5 + $0x30] sm:$0xff]
    %v58 = vld [vmem:[#allocation5 + $0x38] sm:$0xff]
    %v59 = vld [vmem:[#allocation5 + $0x40] sm:$0xff]
    %v60 = vld [vmem:[#allocation5 + $0x48] sm:$0xff]
    %v61 = vld [vmem:[#allocation5 + $0x50] sm:$0xff]
    %v62 = vld [vmem:[#allocation5 + $0x58] sm:$0xff]
    %v63 = vld [vmem:[#allocation5 + $0x60] sm:$0xff]
    %v64 = vld [vmem:[#allocation5 + $0x68] sm:$0xff]
    %v65 = vld [vmem:[#allocation5 + $0x70] sm:$0xff]
    %v66 = vld [vmem:[#allocation5 + $0x78] sm:$0xff]
    %v67 = vld [vmem:[#allocation5 + $0x80] sm:$0xff]
    %v68 = vld [vmem:[#allocation5 + $0x88] sm:$0xff]
    %v69 = vld [vmem:[#allocation5 + $0x90] sm:$0xff]
    %v70 = vld [vmem:[#allocation5 + $0x98] sm:$0xff]
    %v71 = vld [vmem:[#allocation5 + $0xa0] sm:$0xff]
    %v72 = vld [vmem:[#allocation5 + $0xa8] sm:$0xff]
    %v73 = vld [vmem:[#allocation5 + $0xb0] sm:$0xff]
    %v74 = vld [vmem:[#allocation5 + $0xb8] sm:$0xff]
    %v75 = vld [vmem:[#allocation5 + $0xc0] sm:$0xff]
    %v76 = vld [vmem:[#allocation5 + $0xc8] sm:$0xff]
    %v77 = vld [vmem:[#allocation5 + $0xd0] sm:$0xff]
    %v78 = vld [vmem:[#allocation5 + $0xd8] sm:$0xff]
    %v79 = vld [vmem:[#allocation5 + $0xe0] sm:$0xff]
    %v80 = vld [vmem:[#allocation5 + $0xe8] sm:$0xff]
    %v81 = vld [vmem:[#allocation5 + $0xf0] sm:$0xff]
    %v82 = vld [vmem:[#allocation5 + $0xf8] sm:$0xff]
    %v83 = vld [vmem:[#allocation5 + $0x100] sm:$0xff]
    %v84 = vld [vmem:[#allocation5 + $0x108] sm:$0xff]
    %v85 = vld [vmem:[#allocation5 + $0x110] sm:$0xff]
    %v86 = vld [vmem:[#allocation5 + $0x118] sm:$0xff]
    %v87 = vld [vmem:[#allocation5 + $0x120] sm:$0xff]
    %v88 = vld [vmem:[#allocation5 + $0x128] sm:$0xff]
    %v89 = vld [vmem:[#allocation5 + $0x130] sm:$0xff]
    %v90 = vld [vmem:[#allocation5 + $0x138] sm:$0xff]
    %v91 = vld [vmem:[#allocation5 + $0x140] sm:$0xff]
    %v92 = vld [vmem:[#allocation5 + $0x148] sm:$0xff]
    %v93 = vld [vmem:[#allocation5 + $0x150] sm:$0xff]
    %v94 = vld [vmem:[#allocation5 + $0x158] sm:$0xff]
    %v95 = vld [vmem:[#allocation5 + $0x160] sm:$0xff]
    %v96 = vld [vmem:[#allocation5 + $0x168] sm:$0xff]
    %v97 = vld [vmem:[#allocation5 + $0x170] sm:$0xff]
    %v98 = vld [vmem:[#allocation5 + $0x178] sm:$0xff]
    %v99 = vld [vmem:[#allocation5 + $0x180] sm:$0xff]
    %v100 = vld [vmem:[#allocation5 + $0x188] sm:$0xff]
    %v101 = vld [vmem:[#allocation5 + $0x190] sm:$0xff]
    %v102 = vld [vmem:[#allocation5 + $0x198] sm:$0xff]
    %v103 = vld [vmem:[#allocation5 + $0x1a0] sm:$0xff]
    %v104 = vld [vmem:[#allocation5 + $0x1a8] sm:$0xff]
    %v105 = vld [vmem:[#allocation5 + $0x1b0] sm:$0xff]
    %v106 = vld [vmem:[#allocation5 + $0x1b8] sm:$0xff]
    %v107 = vld [vmem:[#allocation5 + $0x1c0] sm:$0xff]
    %v108 = vld [vmem:[#allocation5 + $0x1c8] sm:$0xff]
    %v109 = vld [vmem:[#allocation5 + $0x1d0] sm:$0xff]
    %v110 = vld [vmem:[#allocation5 + $0x1d8] sm:$0xff]
    %v111 = vld [vmem:[#allocation5 + $0x1e0] sm:$0xff]
    %v112 = vld [vmem:[#allocation5 + $0x1e8] sm:$0xff]
    %v113 = vld [vmem:[#allocation5 + $0x1f0] sm:$0xff]
    %v114 = vld [vmem:[#allocation5 + $0x1f8] sm:$0xff]
    %v115 = vld [vmem:[#allocation5 + $0x200] sm:$0xff]
    %v116 = vld [vmem:[#allocation5 + $0x208] sm:$0xff]
    %v117 = vld [vmem:[#allocation5 + $0x210] sm:$0xff]
    %v118 = vld [vmem:[#allocation5 + $0x218] sm:$0xff]
    %v119 = vld [vmem:[#allocation5 + $0x220] sm:$0xff]
    %v120 = vld [vmem:[#allocation5 + $0x228] sm:$0xff]
    %v121 = vld [vmem:[#allocation5 + $0x230] sm:$0xff]
    %v122 = vld [vmem:[#allocation5 + $0x238] sm:$0xff]
    %v123 = vld [vmem:[#allocation5 + $0x240] sm:$0xff]
    %v124 = vld [vmem:[#allocation5 + $0x248] sm:$0xff]
    %v125 = vld [vmem:[#allocation5 + $0x250] sm:$0xff]
    %v126 = vld [vmem:[#allocation5 + $0x258] sm:$0xff]
    %v127 = vld [vmem:[#allocation5 + $0x260] sm:$0xff]
    %v128 = vld [vmem:[#allocation5 + $0x268] sm:$0xff]
    %v129 = vld [vmem:[#allocation5 + $0x270] sm:$0xff]
    %v130 = vld [vmem:[#allocation5 + $0x278] sm:$0xff]
    %v131 = vld [vmem:[#allocation5 + $0x280] sm:$0xff]
    %v132 = vld [vmem:[#allocation5 + $0x288] sm:$0xff]
    %v133 = vld [vmem:[#allocation5 + $0x290] sm:$0xff]
    %v134 = vld [vmem:[#allocation5 + $0x298] sm:$0xff]
    %v135 = vld [vmem:[#allocation5 + $0x2a0] sm:$0xff]
    %v136 = vld [vmem:[#allocation5 + $0x2a8] sm:$0xff]
    %v137 = vld [vmem:[#allocation5 + $0x2b0] sm:$0xff]
    %v138 = vld [vmem:[#allocation5 + $0x2b8] sm:$0xff]
    %v139 = vld [vmem:[#allocation5 + $0x2c0] sm:$0xff]
    %v140 = vld [vmem:[#allocation5 + $0x2c8] sm:$0xff]
    %v141 = vld [vmem:[#allocation5 + $0x2d0] sm:$0xff]
    %v142 = vld [vmem:[#allocation5 + $0x2d8] sm:$0xff]
    %v143 = vld [vmem:[#allocation5 + $0x2e0] sm:$0xff]
    %v144 = vld [vmem:[#allocation5 + $0x2e8] sm:$0xff]
    %v145 = vld [vmem:[#allocation5 + $0x2f0] sm:$0xff]
    %v146 = vld [vmem:[#allocation5 + $0x2f8] sm:$0xff]
    %v147 = vld [vmem:[%s2] sm:$0x1]
    %v149 = vlaneseq
    %v150 = vshrl.u32 %v149, 7
    %v151 = vsub.s32 0, %v150
    %v152 = vrot.slane %v147, %v151
    %v162 = vcombine.low %v43, %v45
    %v163 = vcombine.high %v43, %v45
    %v164 = vcombine.low %v47, %v49
    %v165 = vcombine.high %v47, %v49
    %v167 = vunpack.c.l.s4 1983009808
    %v168 = vunpack.c.0.s8 %v167
    %v169 = vlaneseq
    %v170 = vshrl.u32 %v169, 7
    %v171 = vsub.s32 %v168, %v170
    %v172 = vrot.slane %v162, %v171
    %v174 = vunpack.c.l.s4 1983009808
    %v175 = vunpack.c.0.s8 %v174
    %v176 = vlaneseq
    %v177 = vshrl.u32 %v176, 7
    %v178 = vsub.s32 %v175, %v177
    %v179 = vrot.slane %v163, %v178
    %v181 = vunpack.c.l.s4 1983009808
    %v182 = vunpack.c.0.s8 %v181
    %v183 = vlaneseq
    %v184 = vshrl.u32 %v183, 7
    %v185 = vsub.s32 %v182, %v184
    %v186 = vrot.slane %v164, %v185
    %v188 = vunpack.c.l.s4 1983009808
    %v189 = vunpack.c.0.s8 %v188
    %v190 = vlaneseq
    %v191 = vshrl.u32 %v190, 7
    %v192 = vsub.s32 %v189, %v191
    %v193 = vrot.slane %v165, %v192
    %v194 = vcombine.low %v172, %v186
    %v195 = vcombine.high %v172, %v186
    %v196 = vcombine.low %v179, %v193
    %v197 = vcombine.high %v179, %v193
    %v198 = vcombine.low %v44, %v46
    %v199 = vcombine.low %v48, %v50
    %v201 = vunpack.c.l.s4 1983009808
    %v202 = vunpack.c.0.s8 %v201
    %v203 = vlaneseq
    %v204 = vshrl.u32 %v203, 7
    %v205 = vsub.s32 %v202, %v204
    %v206 = vrot.slane %v198, %v205
    %v208 = vunpack.c.l.s4 1983009808
    %v209 = vunpack.c.0.s8 %v208
    %v210 = vlaneseq
    %v211 = vshrl.u32 %v210, 7
    %v212 = vsub.s32 %v209, %v211
    %v213 = vrot.slane %v199, %v212
    %v214 = vcombine.low %v206, %v213
    %v215 = vcombine.high %v206, %v213
    %222 = vmatprep.subr.mxu0 0.0
    %223 = vmatpush1.msra.mxu0 %v66
    %224 = vmatprep.subr.mxu0 0.0
    %225 = vmatpush1.msra.mxu0 %v65
    %226 = vmatprep.subr.mxu0 0.0
    %227 = vmatpush1.msra.mxu0 %v64
    %228 = vmatprep.subr.mxu0 0.0
    %229 = vmatpush1.msra.mxu0 %v63
    %230 = vmatprep.subr.mxu0 0.0
    %231 = vmatpush1.msra.mxu0 %v62
    %232 = vmatprep.subr.mxu0 0.0
    %233 = vmatpush1.msra.mxu0 %v61
    %234 = vmatprep.subr.mxu0 0.0
    %235 = vmatpush1.msra.mxu0 %v60
    %236 = vmatprep.subr.mxu0 0.0
    %237 = vmatpush1.msra.mxu0 %v59
    %238 = vmatprep.subr.mxu0 0.0
    %239 = vmatpush1.msra.mxu0 %v58
    %240 = vmatprep.subr.mxu0 0.0
    %241 = vmatpush1.msra.mxu0 %v57
    %242 = vmatprep.subr.mxu0 0.0
    %243 = vmatpush1.msra.mxu0 %v56
    %244 = vmatprep.subr.mxu0 0.0
    %245 = vmatpush1.msra.mxu0 %v55
    %246 = vmatprep.subr.mxu0 0.0
    %247 = vmatpush1.msra.mxu0 %v54
    %248 = vmatprep.subr.mxu0 0.0
    %249 = vmatpush1.msra.mxu0 %v53
    %250 = vmatprep.subr.mxu0 0.0
    %251 = vmatpush1.msra.mxu0 %v52
    %252 = vmatprep.subr.mxu0 0.0
    %253 = vmatpush1.msra.mxu0 %v51
    %254 = vmatprep.subr.mxu0 0.0
    %255 = vmatpush2.msra.mxu0 %v82
    %256 = vmatprep.subr.mxu0 0.0
    %257 = vmatpush2.msra.mxu0 %v81
    %258 = vmatprep.subr.mxu0 0.0
    %259 = vmatpush2.msra.mxu0 %v80
    %260 = vmatprep.subr.mxu0 0.0
    %261 = vmatpush2.msra.mxu0 %v79
    %262 = vmatprep.subr.mxu0 0.0
    %263 = vmatpush2.msra.mxu0 %v78
    %264 = vmatprep.subr.mxu0 0.0
    %265 = vmatpush2.msra.mxu0 %v77
    %266 = vmatprep.subr.mxu0 0.0
    %267 = vmatpush2.msra.mxu0 %v76
    %268 = vmatprep.subr.mxu0 0.0
    %269 = vmatpush2.msra.mxu0 %v75
    %270 = vmatprep.subr.mxu0 0.0
    %271 = vmatpush2.msra.mxu0 %v74
    %272 = vmatprep.subr.mxu0 0.0
    %273 = vmatpush2.msra.mxu0 %v73
    %274 = vmatprep.subr.mxu0 0.0
    %275 = vmatpush2.msra.mxu0 %v72
    %276 = vmatprep.subr.mxu0 0.0
    %277 = vmatpush2.msra.mxu0 %v71
    %278 = vmatprep.subr.mxu0 0.0
    %279 = vmatpush2.msra.mxu0 %v70
    %280 = vmatprep.subr.mxu0 0.0
    %281 = vmatpush2.msra.mxu0 %v69
    %282 = vmatprep.subr.mxu0 0.0
    %283 = vmatpush2.msra.mxu0 %v68
    %284 = vmatprep.subr.mxu0 0.0
    %285 = vmatpush2.msra.mxu0 %v67
    %286 = vmatprep.mubr.f32.mxu0 %v195
    %287 = vmatmul.mubr.f32.gmra.mxu0 %v194
    %v288 = vpop.f32.mrf.mxu0
    %v289 = vadd.f32 %v152, %v288
    %v290 = vpop.f32.mrf.mxu0
    %291 = vdwg.mxu0
    %292 = vmatprep.subr.mxu0 0.0
    %293 = vmatpush1.msra.mxu0 %v98
    %294 = vmatprep.subr.mxu0 0.0
    %295 = vmatpush1.msra.mxu0 %v97
    %296 = vmatprep.subr.mxu0 0.0
    %297 = vmatpush1.msra.mxu0 %v96
    %298 = vmatprep.subr.mxu0 0.0
    %299 = vmatpush1.msra.mxu0 %v95
    %300 = vmatprep.subr.mxu0 0.0
    %301 = vmatpush1.msra.mxu0 %v94
    %302 = vmatprep.subr.mxu0 0.0
    %303 = vmatpush1.msra.mxu0 %v93
    %304 = vmatprep.subr.mxu0 0.0
    %305 = vmatpush1.msra.mxu0 %v92
    %306 = vmatprep.subr.mxu0 0.0
    %307 = vmatpush1.msra.mxu0 %v91
    %308 = vmatprep.subr.mxu0 0.0
    %309 = vmatpush1.msra.mxu0 %v90
    %310 = vmatprep.subr.mxu0 0.0
    %311 = vmatpush1.msra.mxu0 %v89
    %312 = vmatprep.subr.mxu0 0.0
    %313 = vmatpush1.msra.mxu0 %v88
    %314 = vmatprep.subr.mxu0 0.0
    %315 = vmatpush1.msra.mxu0 %v87
    %316 = vmatprep.subr.mxu0 0.0
    %317 = vmatpush1.msra.mxu0 %v86
    %318 = vmatprep.subr.mxu0 0.0
    %319 = vmatpush1.msra.mxu0 %v85
    %320 = vmatprep.subr.mxu0 0.0
    %321 = vmatpush1.msra.mxu0 %v84
    %322 = vmatprep.subr.mxu0 0.0
    %323 = vmatpush1.msra.mxu0 %v83
    %324 = vmatprep.subr.mxu0 0.0
    %325 = vmatpush2.msra.mxu0 %v114
    %326 = vmatprep.subr.mxu0 0.0
    %327 = vmatpush2.msra.mxu0 %v113
    %328 = vmatprep.subr.mxu0 0.0
    %329 = vmatpush2.msra.mxu0 %v112
    %330 = vmatprep.subr.mxu0 0.0
    %331 = vmatpush2.msra.mxu0 %v111
    %332 = vmatprep.subr.mxu0 0.0
    %333 = vmatpush2.msra.mxu0 %v110
    %334 = vmatprep.subr.mxu0 0.0
    %335 = vmatpush2.msra.mxu0 %v109
    %336 = vmatprep.subr.mxu0 0.0
    %337 = vmatpush2.msra.mxu0 %v108
    %338 = vmatprep.subr.mxu0 0.0
    %339 = vmatpush2.msra.mxu0 %v107
    %340 = vmatprep.subr.mxu0 0.0
    %341 = vmatpush2.msra.mxu0 %v106
    %342 = vmatprep.subr.mxu0 0.0
    %343 = vmatpush2.msra.mxu0 %v105
    %344 = vmatprep.subr.mxu0 0.0
    %345 = vmatpush2.msra.mxu0 %v104
    %346 = vmatprep.subr.mxu0 0.0
    %347 = vmatpush2.msra.mxu0 %v103
    %348 = vmatprep.subr.mxu0 0.0
    %349 = vmatpush2.msra.mxu0 %v102
    %350 = vmatprep.subr.mxu0 0.0
    %351 = vmatpush2.msra.mxu0 %v101
    %352 = vmatprep.subr.mxu0 0.0
    %353 = vmatpush2.msra.mxu0 %v100
    %354 = vmatprep.subr.mxu0 0.0
    %355 = vmatpush2.msra.mxu0 %v99
    %356 = vmatprep.mubr.f32.mxu0 %v197
    %357 = vmatmul.mubr.f32.gmra.mxu0 %v196
    %v358 = vpop.f32.mrf.mxu0
    %v359 = vadd.f32 %v289, %v358
    %v360 = vpop.f32.mrf.mxu0
    %361 = vdwg.mxu0
    %362 = vmatprep.subr.mxu0 0.0
    %363 = vmatpush1.msra.mxu0 %v130
    %364 = vmatprep.subr.mxu0 0.0
    %365 = vmatpush1.msra.mxu0 %v129
    %366 = vmatprep.subr.mxu0 0.0
    %367 = vmatpush1.msra.mxu0 %v128
    %368 = vmatprep.subr.mxu0 0.0
    %369 = vmatpush1.msra.mxu0 %v127
    %370 = vmatprep.subr.mxu0 0.0
    %371 = vmatpush1.msra.mxu0 %v126
    %372 = vmatprep.subr.mxu0 0.0
    %373 = vmatpush1.msra.mxu0 %v125
    %374 = vmatprep.subr.mxu0 0.0
    %375 = vmatpush1.msra.mxu0 %v124
    %376 = vmatprep.subr.mxu0 0.0
    %377 = vmatpush1.msra.mxu0 %v123
    %378 = vmatprep.subr.mxu0 0.0
    %379 = vmatpush1.msra.mxu0 %v122
    %380 = vmatprep.subr.mxu0 0.0
    %381 = vmatpush1.msra.mxu0 %v121
    %382 = vmatprep.subr.mxu0 0.0
    %383 = vmatpush1.msra.mxu0 %v120
    %384 = vmatprep.subr.mxu0 0.0
    %385 = vmatpush1.msra.mxu0 %v119
    %386 = vmatprep.subr.mxu0 0.0
    %387 = vmatpush1.msra.mxu0 %v118
    %388 = vmatprep.subr.mxu0 0.0
    %389 = vmatpush1.msra.mxu0 %v117
    %390 = vmatprep.subr.mxu0 0.0
    %391 = vmatpush1.msra.mxu0 %v116
    %392 = vmatprep.subr.mxu0 0.0
    %393 = vmatpush1.msra.mxu0 %v115
    %394 = vmatprep.subr.mxu0 0.0
    %395 = vmatpush2.msra.mxu0 %v146
    %396 = vmatprep.subr.mxu0 0.0
    %397 = vmatpush2.msra.mxu0 %v145
    %398 = vmatprep.subr.mxu0 0.0
    %399 = vmatpush2.msra.mxu0 %v144
    %400 = vmatprep.subr.mxu0 0.0
    %401 = vmatpush2.msra.mxu0 %v143
    %402 = vmatprep.subr.mxu0 0.0
    %403 = vmatpush2.msra.mxu0 %v142
    %404 = vmatprep.subr.mxu0 0.0
    %405 = vmatpush2.msra.mxu0 %v141
    %406 = vmatprep.subr.mxu0 0.0
    %407 = vmatpush2.msra.mxu0 %v140
    %408 = vmatprep.subr.mxu0 0.0
    %409 = vmatpush2.msra.mxu0 %v139
    %410 = vmatprep.subr.mxu0 0.0
    %411 = vmatpush2.msra.mxu0 %v138
    %412 = vmatprep.subr.mxu0 0.0
    %413 = vmatpush2.msra.mxu0 %v137
    %414 = vmatprep.subr.mxu0 0.0
    %415 = vmatpush2.msra.mxu0 %v136
    %416 = vmatprep.subr.mxu0 0.0
    %417 = vmatpush2.msra.mxu0 %v135
    %418 = vmatprep.subr.mxu0 0.0
    %419 = vmatpush2.msra.mxu0 %v134
    %420 = vmatprep.subr.mxu0 0.0
    %421 = vmatpush2.msra.mxu0 %v133
    %422 = vmatprep.subr.mxu0 0.0
    %423 = vmatpush2.msra.mxu0 %v132
    %424 = vmatprep.subr.mxu0 0.0
    %425 = vmatpush2.msra.mxu0 %v131
    %426 = vmatprep.mubr.f32.mxu0 %v215
    %427 = vmatmul.mubr.f32.gmra.mxu0 %v214
    %v428 = vpop.f32.mrf.mxu0
    %v429 = vadd.f32 %v359, %v428
    %v430 = vpop.f32.mrf.mxu0
    %431 = vdwg.mxu0
    %432 = vst [vmem:[#allocation7] sm:$0xff] %v429
    // Predicated region
    $region22: #{tpu_custom_call.1} parent=1 // pred_check
      _
    $region23: #{tpu_custom_call.1} parent=1 // pred_check_branch
      %434 = sbr.rel (0) target = $region25
    $region24: #{tpu_custom_call.1} parent=1 // pred_region
      %s436 = ssub.s32 128, 32
      %437 = vsyncadd [#allocation4], %s436
      %s438 = sshll.u32 [#allocation7], 4
      %s439 = int_to_ptr.vmem [resolvable:$true] %s438
      %444 = dma.vmem_to_hbm [thread:$0]  %s439, 32, %s3, [#allocation4], 32, 32, 2
    $region25: #{tpu_custom_call.1} parent=1 // pred_fallthru
      _
    // Predicated region
    $region26: #{tpu_custom_call.1} parent=1 // pred_check
      _
    $region27: #{tpu_custom_call.1} parent=1 // pred_check_branch
      %446 = sbr.rel (0) target = $region29
    $region28: #{tpu_custom_call.1} parent=1 // pred_region
      %447 = dma.done [#allocation4], 128
    $region29: #{tpu_custom_call.1} parent=1 // pred_fallthru
      _
    %448 = vsyncpa [#allocation3], 1
    %449 = vsyncpa [#allocation6], 1
    %450 = vsyncpa [#allocation4], 1

</llo_original>
